<compile_context>
chip_gen: v7x
topology: tpu7x:2x2x1
jax: 0.10.0
libtpu: 0.0.40
codegen_flags: <defaults>
</compile_context>

<pallas_src>
import jax
import jax.numpy as jnp
from jax.experimental import pallas as pl
from jax.experimental.pallas import tpu as pltpu

INPUT_SIZE = 1
OUTPUT_SIZE = 1
HIDDEN_LAYERS = 8            # total hidden Linear layers with ReLU
NEURONS = 64
NUM_MID = HIDDEN_LAYERS - 1  # Linear(64,64) layers after the first Linear(1,64)

LANE = 128                   # TPU lane width
SUB = 256                    # lanes per interleaved sub-chunk inside the kernel


def _round_up(n, m):
    return ((n + m - 1) // m) * m


def _cdiv(a, b):
    return (a + b - 1) // b


def _default_bf16_epilogue():
    """bf16 element-wise epilogue only on chips with a bf16 VALU (v6e/v7x+)."""
    try:
        kind = jax.devices()[0].device_kind.lower()
    except Exception:
        return True
    if any(tag in kind for tag in ("v2", "v3", "v4", "v5")):
        return False
    return True


def _choose_tiling(B, tile_b):
    """Pick (padded_batch, tile_width), both lane counts (multiples of 128)."""
    Bp0 = _round_up(max(B, 1), LANE)
    if Bp0 < 2 * SUB:
        # Tiny batch: one small tile (128/256/384 lanes).
        return Bp0, Bp0
    # Tile width: multiple of 2*SUB (so sub-chunks pair up), capped at tile_b, and
    # small enough that the grid has >= 2 steps when there is enough work (v7x 2 TCs).
    tb = min(_round_up(tile_b, 2 * SUB), _round_up(_cdiv(Bp0, 2), 2 * SUB))
    Bp = _round_up(Bp0, tb)
    return Bp, tb


def _make_kernel(tb, bf16_epilogue):
    # Sub-chunk width inside the tile (tb is always a multiple of 128).
    subw = SUB if (tb >= SUB and tb % SUB == 0) else LANE
    n_chunks = tb // subw

    def kernel(x_ref, w_in_ref, b_in_ref, w_hid_ref, b_hid_ref,
               w_out_ref, b_out_ref, o_ref):
        w_in = w_in_ref[...]                                  # (64, 1)  f32
        b_in = b_in_ref[...]                                  # (64, 1)  f32
        w_out = w_out_ref[...]                                # (1, 64)  bf16
        b_out = b_out_ref[...]                                # (1, 1)   f32

        def first_layer(off):
            # K=1 -> VPU outer product:  (64,1)*(1,subw)+(64,1) -> (64,subw), ReLU.
            xc = x_ref[:, pl.ds(off, subw)]                   # (1, subw) f32
            h = jnp.maximum(w_in * xc + b_in, 0.0)            # (64, subw) f32
            return h.astype(jnp.bfloat16) if bf16_epilogue else h

        # Process the tile as interleaved pairs of lane sub-chunks: two independent
        # layer chains unrolled together -> MXU matmul of one chunk overlaps the
        # VPU bias+ReLU epilogue of the other.
        for p in range(0, n_chunks, 2):
            offs = [p * subw] + ([(p + 1) * subw] if p + 1 < n_chunks else [])
            hs = [first_layer(off) for off in offs]

            for i in range(NUM_MID):                          # statically unrolled
                w = w_hid_ref[i]                              # (64, 64) bf16 (stationary)
                b = b_hid_ref[i]                              # (64, 1)  f32
                if bf16_epilogue:
                    b16 = b.astype(jnp.bfloat16)
                    # MXU accumulates in f32; epilogue (cast+bias+ReLU) in bf16 so the
                    # carried activation is already bf16 for the next dot.
                    hs = [jnp.maximum(
                              jnp.dot(w, h, preferred_element_type=jnp.float32)
                              .astype(jnp.bfloat16) + b16, 0.0)
                          for h in hs]
                else:
                    # v5e path: f32 element-wise math, bf16 only on the MXU operands.
                    hs = [jnp.maximum(
                              jnp.dot(w, h.astype(jnp.bfloat16),
                                      preferred_element_type=jnp.float32) + b, 0.0)
                          for h in hs]

            for off, h in zip(offs, hs):
                hb = h if bf16_epilogue else h.astype(jnp.bfloat16)
                out = jnp.dot(w_out, hb, preferred_element_type=jnp.float32)  # (1, subw)
                o_ref[:, pl.ds(off, subw)] = (out + b_out).astype(o_ref.dtype)

    return kernel


def mlp_forward(x, params, tile_b=2048, bf16_epilogue=None):
    """x: (B, INPUT_SIZE) float32 -> (B, OUTPUT_SIZE) float32."""
    if bf16_epilogue is None:
        bf16_epilogue = _default_bf16_epilogue()

    w_in, b_in, w_hid, b_hid, w_out, b_out = params
    B = x.shape[0]
    Bp, tb = _choose_tiling(B, tile_b)

    # Lane-dense layout: batch on the last (lane) dim, padded to the tiled extent.
    x_t = x.T                                  # (INPUT_SIZE, B)
    if Bp != B:
        x_t = jnp.pad(x_t, ((0, 0), (0, Bp - B)))

    w_hid_bf16 = w_hid.astype(jnp.bfloat16)    # MXU-native operand dtype
    w_out_bf16 = w_out.astype(jnp.bfloat16)    # single-pass bf16 output matmul

    weight_bytes = (w_in.size + b_in.size + b_hid.size + b_out.size) * 4 \
                   + (w_hid_bf16.size + w_out_bf16.size) * 2
    flops = 2 * Bp * (INPUT_SIZE * NEURONS
                      + NUM_MID * NEURONS * NEURONS
                      + NEURONS * OUTPUT_SIZE)

    out_t = pl.pallas_call(
        _make_kernel(tb, bf16_epilogue),
        out_shape=jax.ShapeDtypeStruct((OUTPUT_SIZE, Bp), jnp.float32),
        grid_spec=pltpu.PrefetchScalarGridSpec(
            num_scalar_prefetch=0,
            grid=(Bp // tb,),
            in_specs=[
                # batch-tiled activations
                pl.BlockSpec((INPUT_SIZE, tb), lambda i: (0, i)),            # x (1, tb)
                # weights/biases: constant index_map -> resident in VMEM, DMA'd once
                pl.BlockSpec((NEURONS, INPUT_SIZE), lambda i: (0, 0)),       # w_in  (64, 1)
                pl.BlockSpec((NEURONS, 1), lambda i: (0, 0)),                # b_in  (64, 1)
                pl.BlockSpec((NUM_MID, NEURONS, NEURONS),
                             lambda i: (0, 0, 0)),                           # w_hid (7,64,64) bf16
                pl.BlockSpec((NUM_MID, NEURONS, 1), lambda i: (0, 0, 0)),    # b_hid (7,64,1) f32
                pl.BlockSpec((OUTPUT_SIZE, NEURONS), lambda i: (0, 0)),      # w_out (1,64) bf16
                pl.BlockSpec((OUTPUT_SIZE, 1), lambda i: (0, 0)),            # b_out (1,1)
            ],
            out_specs=pl.BlockSpec((OUTPUT_SIZE, tb), lambda i: (0, i)),     # lane-dense out
        ),
        compiler_params=pltpu.CompilerParams(
            dimension_semantics=("parallel",)),
        cost_estimate=pl.CostEstimate(
            flops=flops,
            transcendentals=0,
            bytes_accessed=4 * Bp * (INPUT_SIZE + OUTPUT_SIZE) + weight_bytes),
    )(x_t, w_in, b_in, w_hid_bf16, b_hid, w_out_bf16, b_out)

    return out_t[:, :B].T                      # back to (B, OUTPUT_SIZE)


def init_params(key):
    """PyTorch-style Linear init (U(-1/sqrt(fan_in), +)), PyTorch (out, in) weight layout."""
    ks = jax.random.split(key, 6)

    def unif(k, shape, fan_in):
        bound = 1.0 / jnp.sqrt(jnp.float32(fan_in))
        return jax.random.uniform(k, shape, jnp.float32, -bound, bound)

    w_in = unif(ks[0], (NEURONS, INPUT_SIZE), INPUT_SIZE)        # (64, 1)
    b_in = unif(ks[1], (NEURONS, 1), INPUT_SIZE)                 # (64, 1)
    w_hid = unif(ks[2], (NUM_MID, NEURONS, NEURONS), NEURONS)    # (7, 64, 64)
    b_hid = unif(ks[3], (NUM_MID, NEURONS, 1), NEURONS)          # (7, 64, 1)
    w_out = unif(ks[4], (OUTPUT_SIZE, NEURONS), NEURONS)         # (1, 64)
    b_out = unif(ks[5], (OUTPUT_SIZE, 1), NEURONS)               # (1, 1)
    return (w_in, b_in, w_hid, b_hid, w_out, b_out)


def mlp_reference(x, params, match_kernel_precision=False, bf16_epilogue=False):
    """Plain-JAX reference.  match_kernel_precision mirrors the kernel's precision."""
    w_in, b_in, w_hid, b_hid, w_out, b_out = params
    h = jnp.maximum(x @ w_in.T + b_in.T, 0.0)                    # (B, 64) f32
    if not match_kernel_precision:
        for i in range(NUM_MID):
            h = jnp.maximum(h @ w_hid[i].T + b_hid[i].T, 0.0)
        return h @ w_out.T + b_out.T

    if bf16_epilogue:
        h = h.astype(jnp.bfloat16)
        for i in range(NUM_MID):
            acc = jnp.dot(h, w_hid[i].astype(jnp.bfloat16).T,
                          preferred_element_type=jnp.float32)
            h = jnp.maximum(acc.astype(jnp.bfloat16)
                            + b_hid[i].astype(jnp.bfloat16).T, 0.0)
        out = jnp.dot(h, w_out.astype(jnp.bfloat16).T,
                      preferred_element_type=jnp.float32)
    else:
        for i in range(NUM_MID):
            acc = jnp.dot(h.astype(jnp.bfloat16),
                          w_hid[i].astype(jnp.bfloat16).T,
                          preferred_element_type=jnp.float32)
            h = jnp.maximum(acc + b_hid[i].T, 0.0)
        out = jnp.dot(h.astype(jnp.bfloat16), w_out.astype(jnp.bfloat16).T,
                      preferred_element_type=jnp.float32)
    return out + b_out.T


if __name__ == "__main__":
    key = jax.random.PRNGKey(0)
    k_x, k_p = jax.random.split(key)

    batch = 8
    x = jax.random.normal(k_x, (batch, INPUT_SIZE), jnp.float32)
    params = init_params(k_p)

    auto_bf16 = _default_bf16_epilogue()

    # Auto path (bf16 epilogue on v6e/v7x, f32 element-wise on v5e).
    out = jax.block_until_ready(mlp_forward(x, params))
    assert out.shape == (batch, OUTPUT_SIZE)

    ref_mixed = mlp_reference(x, params, match_kernel_precision=True,
                              bf16_epilogue=auto_bf16)
    ref_f32 = mlp_reference(x, params, match_kernel_precision=False)
    # Check against a reference using the same mixed precision as the kernel.
    assert jnp.allclose(out, ref_mixed, atol=5e-3, rtol=5e-3)
    # Loose sanity check against the pure-f32 (PyTorch-semantics) reference.
    assert jnp.allclose(out, ref_f32, atol=1e-1, rtol=1e-1)

    # f32-epilogue path (v5e numerics) — tight check against its matched reference.
    out_f32ep = jax.block_until_ready(mlp_forward(x, params, bf16_epilogue=False))
    ref_f32ep = mlp_reference(x, params, match_kernel_precision=True,
                              bf16_epilogue=False)
    assert jnp.allclose(out_f32ep, ref_f32ep, atol=1e-4, rtol=1e-4)

    print("KERNEL_OK")
</pallas_src>

<mosaic_0001>
module attributes {stable_mosaic.version = 11 : i64} {
  func.func @kernel(%arg0: i32, %arg1: memref<1x128xf32, #tpu.memory_space<vmem>>, %arg2: memref<64x1xf32, #tpu.memory_space<vmem>>, %arg3: memref<64x1xf32, #tpu.memory_space<vmem>>, %arg4: memref<7x64x64xbf16, #tpu.memory_space<vmem>>, %arg5: memref<7x64x1xf32, #tpu.memory_space<vmem>>, %arg6: memref<1x64xbf16, #tpu.memory_space<vmem>>, %arg7: memref<1x1xf32, #tpu.memory_space<vmem>>, %arg8: memref<1x128xf32, #tpu.memory_space<vmem>>) attributes {dimension_semantics = [#tpu.dimension_semantics<parallel>], iteration_bounds = array<i64: 1>, scalar_prefetch = 0 : i64, scratch_operands = 0 : i64, tpu.core_type = #tpu.core_type<tc>, window_params = [{transform_indices = @transform_0, window_bounds = array<i64: 1, 128>}, {pipeline_mode = #tpu.pipeline_mode<synchronous>, transform_indices = @transform_1, window_bounds = array<i64: 64, 1>}, {pipeline_mode = #tpu.pipeline_mode<synchronous>, transform_indices = @transform_2, window_bounds = array<i64: 64, 1>}, {pipeline_mode = #tpu.pipeline_mode<synchronous>, transform_indices = @transform_3, window_bounds = array<i64: 7, 64, 64>}, {pipeline_mode = #tpu.pipeline_mode<synchronous>, transform_indices = @transform_4, window_bounds = array<i64: 7, 64, 1>}, {pipeline_mode = #tpu.pipeline_mode<synchronous>, transform_indices = @transform_5, window_bounds = array<i64: 1, 64>}, {pipeline_mode = #tpu.pipeline_mode<synchronous>, transform_indices = @transform_6, window_bounds = array<i64: 1, 1>}, {transform_indices = @transform_7, window_bounds = array<i64: 1, 128>}]} {
    %c0 = arith.constant 0 : index
    %c0_0 = arith.constant 0 : index
    %0 = vector.load %arg2[%c0, %c0_0] : memref<64x1xf32, #tpu.memory_space<vmem>>, vector<64x1xf32>
    %c0_1 = arith.constant 0 : index
    %c0_2 = arith.constant 0 : index
    %1 = vector.load %arg3[%c0_1, %c0_2] : memref<64x1xf32, #tpu.memory_space<vmem>>, vector<64x1xf32>
    %c0_3 = arith.constant 0 : index
    %c0_4 = arith.constant 0 : index
    %2 = vector.load %arg6[%c0_3, %c0_4] : memref<1x64xbf16, #tpu.memory_space<vmem>>, vector<1x64xbf16>
    %c0_5 = arith.constant 0 : index
    %c0_6 = arith.constant 0 : index
    %3 = vector.load %arg7[%c0_5, %c0_6] : memref<1x1xf32, #tpu.memory_space<vmem>>, vector<1x1xf32>
    %c0_7 = arith.constant 0 : index
    %c0_8 = arith.constant 0 : index
    %4 = vector.load %arg1[%c0_7, %c0_8] : memref<1x128xf32, #tpu.memory_space<vmem>>, vector<1x128xf32>
    %5 = vector.broadcast %0 : vector<64x1xf32> to vector<64x128xf32>
    %6 = vector.broadcast %4 : vector<1x128xf32> to vector<64x128xf32>
    %7 = arith.mulf %5, %6 : vector<64x128xf32>
    %8 = vector.broadcast %1 : vector<64x1xf32> to vector<64x128xf32>
    %9 = arith.addf %7, %8 : vector<64x128xf32>
    %cst = arith.constant 0.000000e+00 : f32
    %10 = vector.broadcast %cst : f32 to vector<64x128xf32>
    %11 = arith.maximumf %9, %10 : vector<64x128xf32>
    %12 = arith.truncf %11 : vector<64x128xf32> to vector<64x128xbf16>
    %c0_9 = arith.constant 0 : index
    %c0_10 = arith.constant 0 : index
    %c0_11 = arith.constant 0 : index
    %13 = vector.load %arg4[%c0_9, %c0_10, %c0_11] : memref<7x64x64xbf16, #tpu.memory_space<vmem>>, vector<1x64x64xbf16>
    %14 = vector.shape_cast %13 : vector<1x64x64xbf16> to vector<64x64xbf16>
    %c0_12 = arith.constant 0 : index
    %c0_13 = arith.constant 0 : index
    %c0_14 = arith.constant 0 : index
    %15 = vector.load %arg5[%c0_12, %c0_13, %c0_14] : memref<7x64x1xf32, #tpu.memory_space<vmem>>, vector<1x64x1xf32>
    %16 = vector.shape_cast %15 : vector<1x64x1xf32> to vector<64x1xf32>
    %17 = arith.truncf %16 : vector<64x1xf32> to vector<64x1xbf16>
    %cst_15 = arith.constant dense<0.000000e+00> : vector<64x128xf32>
    %18 = tpu.matmul %14, %12, %cst_15 {dimension_numbers = #tpu.dot_dimension_numbers<[1], [0], [0], [1], [0, 0, 1, 1], [], []>} : vector<64x64xbf16>, vector<64x128xbf16>, vector<64x128xf32> -> vector<64x128xf32>
    %19 = arith.truncf %18 : vector<64x128xf32> to vector<64x128xbf16>
    %20 = vector.broadcast %17 : vector<64x1xbf16> to vector<64x128xbf16>
    %21 = arith.addf %19, %20 : vector<64x128xbf16>
    %cst_16 = arith.constant 0.000000e+00 : bf16
    %22 = vector.broadcast %cst_16 : bf16 to vector<64x128xbf16>
    %23 = arith.maximumf %21, %22 : vector<64x128xbf16>
    %c1 = arith.constant 1 : index
    %c0_17 = arith.constant 0 : index
    %c0_18 = arith.constant 0 : index
    %24 = vector.load %arg4[%c1, %c0_17, %c0_18] : memref<7x64x64xbf16, #tpu.memory_space<vmem>>, vector<1x64x64xbf16>
    %25 = vector.shape_cast %24 : vector<1x64x64xbf16> to vector<64x64xbf16>
    %c1_19 = arith.constant 1 : index
    %c0_20 = arith.constant 0 : index
    %c0_21 = arith.constant 0 : index
    %26 = vector.load %arg5[%c1_19, %c0_20, %c0_21] : memref<7x64x1xf32, #tpu.memory_space<vmem>>, vector<1x64x1xf32>
    %27 = vector.shape_cast %26 : vector<1x64x1xf32> to vector<64x1xf32>
    %28 = arith.truncf %27 : vector<64x1xf32> to vector<64x1xbf16>
    %cst_22 = arith.constant dense<0.000000e+00> : vector<64x128xf32>
    %29 = tpu.matmul %25, %23, %cst_22 {dimension_numbers = #tpu.dot_dimension_numbers<[1], [0], [0], [1], [0, 0, 1, 1], [], []>} : vector<64x64xbf16>, vector<64x128xbf16>, vector<64x128xf32> -> vector<64x128xf32>
    %30 = arith.truncf %29 : vector<64x128xf32> to vector<64x128xbf16>
    %31 = vector.broadcast %28 : vector<64x1xbf16> to vector<64x128xbf16>
    %32 = arith.addf %30, %31 : vector<64x128xbf16>
    %cst_23 = arith.constant 0.000000e+00 : bf16
    %33 = vector.broadcast %cst_23 : bf16 to vector<64x128xbf16>
    %34 = arith.maximumf %32, %33 : vector<64x128xbf16>
    %c2 = arith.constant 2 : index
    %c0_24 = arith.constant 0 : index
    %c0_25 = arith.constant 0 : index
    %35 = vector.load %arg4[%c2, %c0_24, %c0_25] : memref<7x64x64xbf16, #tpu.memory_space<vmem>>, vector<1x64x64xbf16>
    %36 = vector.shape_cast %35 : vector<1x64x64xbf16> to vector<64x64xbf16>
    %c2_26 = arith.constant 2 : index
    %c0_27 = arith.constant 0 : index
    %c0_28 = arith.constant 0 : index
    %37 = vector.load %arg5[%c2_26, %c0_27, %c0_28] : memref<7x64x1xf32, #tpu.memory_space<vmem>>, vector<1x64x1xf32>
    %38 = vector.shape_cast %37 : vector<1x64x1xf32> to vector<64x1xf32>
    %39 = arith.truncf %38 : vector<64x1xf32> to vector<64x1xbf16>
    %cst_29 = arith.constant dense<0.000000e+00> : vector<64x128xf32>
    %40 = tpu.matmul %36, %34, %cst_29 {dimension_numbers = #tpu.dot_dimension_numbers<[1], [0], [0], [1], [0, 0, 1, 1], [], []>} : vector<64x64xbf16>, vector<64x128xbf16>, vector<64x128xf32> -> vector<64x128xf32>
    %41 = arith.truncf %40 : vector<64x128xf32> to vector<64x128xbf16>
    %42 = vector.broadcast %39 : vector<64x1xbf16> to vector<64x128xbf16>
    %43 = arith.addf %41, %42 : vector<64x128xbf16>
    %cst_30 = arith.constant 0.000000e+00 : bf16
    %44 = vector.broadcast %cst_30 : bf16 to vector<64x128xbf16>
    %45 = arith.maximumf %43, %44 : vector<64x128xbf16>
    %c3 = arith.constant 3 : index
    %c0_31 = arith.constant 0 : index
    %c0_32 = arith.constant 0 : index
    %46 = vector.load %arg4[%c3, %c0_31, %c0_32] : memref<7x64x64xbf16, #tpu.memory_space<vmem>>, vector<1x64x64xbf16>
    %47 = vector.shape_cast %46 : vector<1x64x64xbf16> to vector<64x64xbf16>
    %c3_33 = arith.constant 3 : index
    %c0_34 = arith.constant 0 : index
    %c0_35 = arith.constant 0 : index
    %48 = vector.load %arg5[%c3_33, %c0_34, %c0_35] : memref<7x64x1xf32, #tpu.memory_space<vmem>>, vector<1x64x1xf32>
    %49 = vector.shape_cast %48 : vector<1x64x1xf32> to vector<64x1xf32>
    %50 = arith.truncf %49 : vector<64x1xf32> to vector<64x1xbf16>
    %cst_36 = arith.constant dense<0.000000e+00> : vector<64x128xf32>
    %51 = tpu.matmul %47, %45, %cst_36 {dimension_numbers = #tpu.dot_dimension_numbers<[1], [0], [0], [1], [0, 0, 1, 1], [], []>} : vector<64x64xbf16>, vector<64x128xbf16>, vector<64x128xf32> -> vector<64x128xf32>
    %52 = arith.truncf %51 : vector<64x128xf32> to vector<64x128xbf16>
    %53 = vector.broadcast %50 : vector<64x1xbf16> to vector<64x128xbf16>
    %54 = arith.addf %52, %53 : vector<64x128xbf16>
    %cst_37 = arith.constant 0.000000e+00 : bf16
    %55 = vector.broadcast %cst_37 : bf16 to vector<64x128xbf16>
    %56 = arith.maximumf %54, %55 : vector<64x128xbf16>
    %c4 = arith.constant 4 : index
    %c0_38 = arith.constant 0 : index
    %c0_39 = arith.constant 0 : index
    %57 = vector.load %arg4[%c4, %c0_38, %c0_39] : memref<7x64x64xbf16, #tpu.memory_space<vmem>>, vector<1x64x64xbf16>
    %58 = vector.shape_cast %57 : vector<1x64x64xbf16> to vector<64x64xbf16>
    %c4_40 = arith.constant 4 : index
    %c0_41 = arith.constant 0 : index
    %c0_42 = arith.constant 0 : index
    %59 = vector.load %arg5[%c4_40, %c0_41, %c0_42] : memref<7x64x1xf32, #tpu.memory_space<vmem>>, vector<1x64x1xf32>
    %60 = vector.shape_cast %59 : vector<1x64x1xf32> to vector<64x1xf32>
    %61 = arith.truncf %60 : vector<64x1xf32> to vector<64x1xbf16>
    %cst_43 = arith.constant dense<0.000000e+00> : vector<64x128xf32>
    %62 = tpu.matmul %58, %56, %cst_43 {dimension_numbers = #tpu.dot_dimension_numbers<[1], [0], [0], [1], [0, 0, 1, 1], [], []>} : vector<64x64xbf16>, vector<64x128xbf16>, vector<64x128xf32> -> vector<64x128xf32>
    %63 = arith.truncf %62 : vector<64x128xf32> to vector<64x128xbf16>
    %64 = vector.broadcast %61 : vector<64x1xbf16> to vector<64x128xbf16>
    %65 = arith.addf %63, %64 : vector<64x128xbf16>
    %cst_44 = arith.constant 0.000000e+00 : bf16
    %66 = vector.broadcast %cst_44 : bf16 to vector<64x128xbf16>
    %67 = arith.maximumf %65, %66 : vector<64x128xbf16>
    %c5 = arith.constant 5 : index
    %c0_45 = arith.constant 0 : index
    %c0_46 = arith.constant 0 : index
    %68 = vector.load %arg4[%c5, %c0_45, %c0_46] : memref<7x64x64xbf16, #tpu.memory_space<vmem>>, vector<1x64x64xbf16>
    %69 = vector.shape_cast %68 : vector<1x64x64xbf16> to vector<64x64xbf16>
    %c5_47 = arith.constant 5 : index
    %c0_48 = arith.constant 0 : index
    %c0_49 = arith.constant 0 : index
    %70 = vector.load %arg5[%c5_47, %c0_48, %c0_49] : memref<7x64x1xf32, #tpu.memory_space<vmem>>, vector<1x64x1xf32>
    %71 = vector.shape_cast %70 : vector<1x64x1xf32> to vector<64x1xf32>
    %72 = arith.truncf %71 : vector<64x1xf32> to vector<64x1xbf16>
    %cst_50 = arith.constant dense<0.000000e+00> : vector<64x128xf32>
    %73 = tpu.matmul %69, %67, %cst_50 {dimension_numbers = #tpu.dot_dimension_numbers<[1], [0], [0], [1], [0, 0, 1, 1], [], []>} : vector<64x64xbf16>, vector<64x128xbf16>, vector<64x128xf32> -> vector<64x128xf32>
    %74 = arith.truncf %73 : vector<64x128xf32> to vector<64x128xbf16>
    %75 = vector.broadcast %72 : vector<64x1xbf16> to vector<64x128xbf16>
    %76 = arith.addf %74, %75 : vector<64x128xbf16>
    %cst_51 = arith.constant 0.000000e+00 : bf16
    %77 = vector.broadcast %cst_51 : bf16 to vector<64x128xbf16>
    %78 = arith.maximumf %76, %77 : vector<64x128xbf16>
    %c6 = arith.constant 6 : index
    %c0_52 = arith.constant 0 : index
    %c0_53 = arith.constant 0 : index
    %79 = vector.load %arg4[%c6, %c0_52, %c0_53] : memref<7x64x64xbf16, #tpu.memory_space<vmem>>, vector<1x64x64xbf16>
    %80 = vector.shape_cast %79 : vector<1x64x64xbf16> to vector<64x64xbf16>
    %c6_54 = arith.constant 6 : index
    %c0_55 = arith.constant 0 : index
    %c0_56 = arith.constant 0 : index
    %81 = vector.load %arg5[%c6_54, %c0_55, %c0_56] : memref<7x64x1xf32, #tpu.memory_space<vmem>>, vector<1x64x1xf32>
    %82 = vector.shape_cast %81 : vector<1x64x1xf32> to vector<64x1xf32>
    %83 = arith.truncf %82 : vector<64x1xf32> to vector<64x1xbf16>
    %cst_57 = arith.constant dense<0.000000e+00> : vector<64x128xf32>
    %84 = tpu.matmul %80, %78, %cst_57 {dimension_numbers = #tpu.dot_dimension_numbers<[1], [0], [0], [1], [0, 0, 1, 1], [], []>} : vector<64x64xbf16>, vector<64x128xbf16>, vector<64x128xf32> -> vector<64x128xf32>
    %85 = arith.truncf %84 : vector<64x128xf32> to vector<64x128xbf16>
    %86 = vector.broadcast %83 : vector<64x1xbf16> to vector<64x128xbf16>
    %87 = arith.addf %85, %86 : vector<64x128xbf16>
    %cst_58 = arith.constant 0.000000e+00 : bf16
    %88 = vector.broadcast %cst_58 : bf16 to vector<64x128xbf16>
    %89 = arith.maximumf %87, %88 : vector<64x128xbf16>
    %cst_59 = arith.constant dense<0.000000e+00> : vector<1x128xf32>
    %90 = tpu.matmul %2, %89, %cst_59 {dimension_numbers = #tpu.dot_dimension_numbers<[1], [0], [0], [1], [0, 0, 1, 1], [], []>} : vector<1x64xbf16>, vector<64x128xbf16>, vector<1x128xf32> -> vector<1x128xf32>
    %91 = vector.broadcast %3 : vector<1x1xf32> to vector<1x128xf32>
    %92 = arith.addf %90, %91 : vector<1x128xf32>
    %c0_60 = arith.constant 0 : index
    %c0_61 = arith.constant 0 : index
    %93 = vector.load %arg8[%c0_60, %c0_61] : memref<1x128xf32, #tpu.memory_space<vmem>>, vector<1x128xf32>
    tpu.vector_store %arg8[%c0_60, %c0_61], %92 {strides = array<i32>} : memref<1x128xf32, #tpu.memory_space<vmem>>, vector<1x128xf32>,
    return
  }
  func.func @transform_0(%arg0: i32) -> (i32, i32) {
    %c0_i32 = arith.constant 0 : i32
    %c0_i32_0 = arith.constant 0 : i32
    return %c0_i32, %arg0 : i32, i32
  }
  func.func @transform_1(%arg0: i32) -> (i32, i32) {
    %c0_i32 = arith.constant 0 : i32
    %c0_i32_0 = arith.constant 0 : i32
    %c0_i32_1 = arith.constant 0 : i32
    return %c0_i32, %c0_i32_0 : i32, i32
  }
  func.func @transform_2(%arg0: i32) -> (i32, i32) {
    %c0_i32 = arith.constant 0 : i32
    %c0_i32_0 = arith.constant 0 : i32
    %c0_i32_1 = arith.constant 0 : i32
    return %c0_i32, %c0_i32_0 : i32, i32
  }
  func.func @transform_3(%arg0: i32) -> (i32, i32, i32) {
    %c0_i32 = arith.constant 0 : i32
    %c0_i32_0 = arith.constant 0 : i32
    %c0_i32_1 = arith.constant 0 : i32
    %c0_i32_2 = arith.constant 0 : i32
    return %c0_i32, %c0_i32_0, %c0_i32_1 : i32, i32, i32
  }
  func.func @transform_4(%arg0: i32) -> (i32, i32, i32) {
    %c0_i32 = arith.constant 0 : i32
    %c0_i32_0 = arith.constant 0 : i32
    %c0_i32_1 = arith.constant 0 : i32
    %c0_i32_2 = arith.constant 0 : i32
    return %c0_i32, %c0_i32_0, %c0_i32_1 : i32, i32, i32
  }
  func.func @transform_5(%arg0: i32) -> (i32, i32) {
    %c0_i32 = arith.constant 0 : i32
    %c0_i32_0 = arith.constant 0 : i32
    %c0_i32_1 = arith.constant 0 : i32
    return %c0_i32, %c0_i32_0 : i32, i32
  }
  func.func @transform_6(%arg0: i32) -> (i32, i32) {
    %c0_i32 = arith.constant 0 : i32
    %c0_i32_0 = arith.constant 0 : i32
    %c0_i32_1 = arith.constant 0 : i32
    return %c0_i32, %c0_i32_0 : i32, i32
  }
  func.func @transform_7(%arg0: i32) -> (i32, i32) {
    %c0_i32 = arith.constant 0 : i32
    %c0_i32_0 = arith.constant 0 : i32
    return %c0_i32, %arg0 : i32, i32
  }
}

</mosaic_0001>

<llo_original>
// kernel: tpu_custom_call.1
$region0: #{tpu_custom_call.1}
  #allocation0 [shape = 'u32[]', space=smem, size = 0x4, offset = 0x4, fixed_abs, tag = 'smem constant byte address 0x4 - core index']
  #allocation1 [shape = 'u32[144,128]{1,0:T(1,128)}', space=vmem, size = 0x12000, scoped, tag = 'internal scratch']
  #allocation2 [shape = 'f32[1,1]{1,0:T(1,128)S(1)}', space=vmem, size = 0x200, scoped, tag = 'scoped memory for tpu_custom_call.1']
  %s0 = inlined_call_operand.vmem [shape: f32[1,128], index: 0, kind: input, shape index: {}]
  %s1 = inlined_call_operand.vmem [shape: f32[64,1], index: 1, kind: input, shape index: {}]
  %s2 = inlined_call_operand.vmem [shape: f32[64,1], index: 2, kind: input, shape index: {}]
  %s3 = inlined_call_operand.vmem [shape: bf16[7,64,64], index: 3, kind: input, shape index: {}]
  %s4 = inlined_call_operand.vmem [shape: f32[7,64,1], index: 4, kind: input, shape index: {}]
  %s5 = inlined_call_operand.vmem [shape: bf16[1,64], index: 5, kind: input, shape index: {}]
  %s6 = inlined_call_operand.<no memory space> [shape: f32[1,1], index: 6, kind: input, shape index: {}]
  %s7 = inlined_call_operand.hbm [shape: f32[1,128], index: 7, kind: output, shape index: {}]
  %s8 = sld [smem:[#allocation0]]
  $region38: #{tpu_custom_call.1} parent=0
    _
  %s10 = ssub.s32 1, %s8
  %s11 = scalar_select 0, %s10, %s8
  %v12 = vstv %s6
  %13 = vst [vmem:[#allocation2] sm:$0x1] %v12
  $region1: #{tpu_custom_call.1} parent=0
    #allocation3 [shape = 'u8[512]{0}', space=vmem, size = 0x400, scoped, tag = 'output window, operand 0, single buffered']
    #allocation4 [shape = 's32[1]{0}', space=sflag, size = 0x4, scoped, tag = 'scoped memory for tpu_custom_call.1']
    %14 = vsyncpa [#allocation4], 0
    // Predicated region
    $region2: #{tpu_custom_call.1} parent=1 // pred_check
      _
    $region3: #{tpu_custom_call.1} parent=1 // pred_check_branch
      %16 = sbr.rel (0) target = $region5
    $region4: #{tpu_custom_call.1} parent=1 // pred_region
      _
    $region5: #{tpu_custom_call.1} parent=1 // pred_fallthru
      _
    // Predicated region
    $region6: #{tpu_custom_call.1} parent=1 // pred_check
      _
    $region7: #{tpu_custom_call.1} parent=1 // pred_check_branch
      %18 = sbr.rel (0) target = $region9
    $region8: #{tpu_custom_call.1} parent=1 // pred_region
      _
    $region9: #{tpu_custom_call.1} parent=1 // pred_fallthru
      _
    // Predicated region
    $region10: #{tpu_custom_call.1} parent=1 // pred_check
      _
    $region11: #{tpu_custom_call.1} parent=1 // pred_check_branch
      %20 = sbr.rel (0) target = $region13
    $region12: #{tpu_custom_call.1} parent=1 // pred_region
      _
    $region13: #{tpu_custom_call.1} parent=1 // pred_fallthru
      _
    // Predicated region
    $region14: #{tpu_custom_call.1} parent=1 // pred_check
      _
    $region15: #{tpu_custom_call.1} parent=1 // pred_check_branch
      %22 = sbr.rel (0) target = $region17
    $region16: #{tpu_custom_call.1} parent=1 // pred_region
      _
    $region17: #{tpu_custom_call.1} parent=1 // pred_fallthru
      _
    // Predicated region
    $region18: #{tpu_custom_call.1} parent=1 // pred_check
      _
    $region19: #{tpu_custom_call.1} parent=1 // pred_check_branch
      %24 = sbr.rel (0) target = $region21
    $region20: #{tpu_custom_call.1} parent=1 // pred_region
      _
    $region21: #{tpu_custom_call.1} parent=1 // pred_fallthru
      _
    // Predicated region
    $region22: #{tpu_custom_call.1} parent=1 // pred_check
      _
    $region23: #{tpu_custom_call.1} parent=1 // pred_check_branch
      %26 = sbr.rel (0) target = $region25
    $region24: #{tpu_custom_call.1} parent=1 // pred_region
      _
    $region25: #{tpu_custom_call.1} parent=1 // pred_fallthru
      _
    // Predicated region
    $region26: #{tpu_custom_call.1} parent=1 // pred_check
      _
    $region27: #{tpu_custom_call.1} parent=1 // pred_check_branch
      %28 = sbr.rel (0) target = $region29
    $region28: #{tpu_custom_call.1} parent=1 // pred_region
      _
    $region29: #{tpu_custom_call.1} parent=1 // pred_fallthru
      _
    %v30 = vld [vmem:[%s1] sm:$0xff]
    %v31 = vld [vmem:[%s1 + $0x8] sm:$0xff]
    %v32 = vld [vmem:[%s1 + $0x10] sm:$0xff]
    %v33 = vld [vmem:[%s1 + $0x18] sm:$0xff]
    %v34 = vld [vmem:[%s1 + $0x20] sm:$0xff]
    %v35 = vld [vmem:[%s1 + $0x28] sm:$0xff]
    %v36 = vld [vmem:[%s1 + $0x30] sm:$0xff]
    %v37 = vld [vmem:[%s1 + $0x38] sm:$0xff]
    %v38 = vld [vmem:[%s2] sm:$0xff]
    %v39 = vld [vmem:[%s2 + $0x8] sm:$0xff]
    %v40 = vld [vmem:[%s2 + $0x10] sm:$0xff]
    %v41 = vld [vmem:[%s2 + $0x18] sm:$0xff]
    %v42 = vld [vmem:[%s2 + $0x20] sm:$0xff]
    %v43 = vld [vmem:[%s2 + $0x28] sm:$0xff]
    %v44 = vld [vmem:[%s2 + $0x30] sm:$0xff]
    %v45 = vld [vmem:[%s2 + $0x38] sm:$0xff]
    %v46 = vld [vmem:[%s5] sm:$0x1]
    %v47 = vld [vmem:[#allocation2] sm:$0x1]
    %v48 = vld [vmem:[%s0] sm:$0x1]
    %50 = vset.pattern.permute.xlu0 0
    %51 = vperm.xlu0 %50, %v30
    %v52 = vpop.permute.xlu0 %51
    %55 = vset.pattern.permute.xlu0 0
    %56 = vperm.xlu0 %55, %v31
    %v57 = vpop.permute.xlu0 %56
    %60 = vset.pattern.permute.xlu0 0
    %61 = vperm.xlu0 %60, %v32
    %v62 = vpop.permute.xlu0 %61
    %65 = vset.pattern.permute.xlu0 0
    %66 = vperm.xlu0 %65, %v33
    %v67 = vpop.permute.xlu0 %66
    %70 = vset.pattern.permute.xlu0 0
    %71 = vperm.xlu0 %70, %v34
    %v72 = vpop.permute.xlu0 %71
    %75 = vset.pattern.permute.xlu0 0
    %76 = vperm.xlu0 %75, %v35
    %v77 = vpop.permute.xlu0 %76
    %80 = vset.pattern.permute.xlu0 0
    %81 = vperm.xlu0 %80, %v36
    %v82 = vpop.permute.xlu0 %81
    %85 = vset.pattern.permute.xlu0 0
    %86 = vperm.xlu0 %85, %v37
    %v87 = vpop.permute.xlu0 %86
    %v90 = vlaneseq
    %v91 = vshrl.u32 %v90, 7
    %v92 = vsub.s32 0, %v91
    %v93 = vrot.slane %v48, %v92
    %v95 = vmul.f32 %v52, %v93
    %v96 = vmul.f32 %v57, %v93
    %v97 = vmul.f32 %v62, %v93
    %v98 = vmul.f32 %v67, %v93
    %v99 = vmul.f32 %v72, %v93
    %v100 = vmul.f32 %v77, %v93
    %v101 = vmul.f32 %v82, %v93
    %v102 = vmul.f32 %v87, %v93
    %104 = vset.pattern.permute.xlu0 0
    %105 = vperm.xlu0 %104, %v38
    %v106 = vpop.permute.xlu0 %105
    %109 = vset.pattern.permute.xlu0 0
    %110 = vperm.xlu0 %109, %v39
    %v111 = vpop.permute.xlu0 %110
    %114 = vset.pattern.permute.xlu0 0
    %115 = vperm.xlu0 %114, %v40
    %v116 = vpop.permute.xlu0 %115
    %119 = vset.pattern.permute.xlu0 0
    %120 = vperm.xlu0 %119, %v41
    %v121 = vpop.permute.xlu0 %120
    %124 = vset.pattern.permute.xlu0 0
    %125 = vperm.xlu0 %124, %v42
    %v126 = vpop.permute.xlu0 %125
    %129 = vset.pattern.permute.xlu0 0
    %130 = vperm.xlu0 %129, %v43
    %v131 = vpop.permute.xlu0 %130
    %134 = vset.pattern.permute.xlu0 0
    %135 = vperm.xlu0 %134, %v44
    %v136 = vpop.permute.xlu0 %135
    %139 = vset.pattern.permute.xlu0 0
    %140 = vperm.xlu0 %139, %v45
    %v141 = vpop.permute.xlu0 %140
    %v143 = vadd.f32 %v95, %v106
    %v144 = vadd.f32 %v96, %v111
    %v145 = vadd.f32 %v97, %v116
    %v146 = vadd.f32 %v98, %v121
    %v147 = vadd.f32 %v99, %v126
    %v148 = vadd.f32 %v100, %v131
    %v149 = vadd.f32 %v101, %v136
    %v150 = vadd.f32 %v102, %v141
    %v151 = vmax.f32 %v143, 0.0
    %v152 = vmax.f32 %v144, 0.0
    %v153 = vmax.f32 %v145, 0.0
    %v154 = vmax.f32 %v146, 0.0
    %v155 = vmax.f32 %v147, 0.0
    %v156 = vmax.f32 %v148, 0.0
    %v157 = vmax.f32 %v149, 0.0
    %v158 = vmax.f32 %v150, 0.0
    %v159 = vpack.c.bf16 %v152, %v151
    %v160 = vpack.c.bf16 %v154, %v153
    %v161 = vpack.c.bf16 %v156, %v155
    %v162 = vpack.c.bf16 %v158, %v157
    %v163 = vld [vmem:[%s3] sm:$0xf]
    %v164 = vld [vmem:[%s3 + $0x4] sm:$0xf]
    %v165 = vld [vmem:[%s3 + $0x8] sm:$0xf]
    %v166 = vld [vmem:[%s3 + $0xc] sm:$0xf]
    %v167 = vld [vmem:[%s3 + $0x10] sm:$0xf]
    %v168 = vld [vmem:[%s3 + $0x14] sm:$0xf]
    %v169 = vld [vmem:[%s3 + $0x18] sm:$0xf]
    %v170 = vld [vmem:[%s3 + $0x1c] sm:$0xf]
    %v171 = vld [vmem:[%s4] sm:$0xff]
    %v172 = vld [vmem:[%s4 + $0x8] sm:$0xff]
    %v173 = vld [vmem:[%s4 + $0x10] sm:$0xff]
    %v174 = vld [vmem:[%s4 + $0x18] sm:$0xff]
    %v175 = vld [vmem:[%s4 + $0x20] sm:$0xff]
    %v176 = vld [vmem:[%s4 + $0x28] sm:$0xff]
    %v177 = vld [vmem:[%s4 + $0x30] sm:$0xff]
    %v178 = vld [vmem:[%s4 + $0x38] sm:$0xff]
    %v179 = vpack.c.bf16 %v172, %v171
    %v180 = vpack.c.bf16 %v174, %v173
    %v181 = vpack.c.bf16 %v176, %v175
    %v182 = vpack.c.bf16 %v178, %v177
    %v191 = vunpack.c.l.b16 %v163
    %v192 = vunpack.c.l.b16 %v164
    %v193 = vunpack.c.l.b16 %v165
    %v194 = vunpack.c.l.b16 %v166
    %v195 = vunpack.c.l.b16 %v167
    %v196 = vunpack.c.l.b16 %v168
    %v197 = vunpack.c.l.b16 %v169
    %v198 = vunpack.c.l.b16 %v170
    %v199 = vpack.c.b16 %v192, %v191
    %v200 = vpack.c.b16 %v194, %v193
    %v201 = vpack.c.b16 %v196, %v195
    %v202 = vpack.c.b16 %v198, %v197
    %vm203 = vcmask 523264
    %v205 = vsel %vm203, %v199, 0
    %v208 = vsel %vm203, %v200, 0
    %v211 = vsel %vm203, %v201, 0
    %v214 = vsel %vm203, %v202, 0
    %216 = vmatprep.subr.bf16.mxu0 0
    %217 = vmatpush1.bf16.msra.mxu0 %v159
    %218 = vmatprep.subr.bf16.mxu0 0
    %219 = vmatpush1.bf16.msra.mxu0 %v160
    %220 = vmatprep.subr.bf16.mxu0 0
    %221 = vmatpush1.bf16.msra.mxu0 %v161
    %222 = vmatprep.subr.bf16.mxu0 0
    %223 = vmatpush1.bf16.msra.mxu0 %v162
    %224 = vmatprep.subr.bf16.mxu0 0
    %225 = vmatpush1.bf16.msra.mxu0 0
    %226 = vmatprep.subr.bf16.mxu0 0
    %227 = vmatpush1.bf16.msra.mxu0 0
    %228 = vmatprep.subr.bf16.mxu0 0
    %229 = vmatpush1.bf16.msra.mxu0 0
    %230 = vmatprep.subr.bf16.mxu0 0
    %231 = vmatpush1.bf16.msra.mxu0 0
    %232 = vmatprep.subr.bf16.mxu0 0
    %233 = vmatpush1.bf16.msra.mxu0 0
    %234 = vmatprep.subr.bf16.mxu0 0
    %235 = vmatpush1.bf16.msra.mxu0 0
    %236 = vmatprep.subr.bf16.mxu0 0
    %237 = vmatpush1.bf16.msra.mxu0 0
    %238 = vmatprep.subr.bf16.mxu0 0
    %239 = vmatpush1.bf16.msra.mxu0 0
    %240 = vmatprep.subr.bf16.mxu0 0
    %241 = vmatpush1.bf16.msra.mxu0 0
    %242 = vmatprep.subr.bf16.mxu0 0
    %243 = vmatpush1.bf16.msra.mxu0 0
    %244 = vmatprep.subr.bf16.mxu0 0
    %245 = vmatpush1.bf16.msra.mxu0 0
    %246 = vmatprep.subr.bf16.mxu0 0
    %247 = vmatpush1.bf16.msra.mxu0 0
    %248 = vmatprep.mubr.bf16.mxu0 0
    %249 = vmatmul.mubr.bf16.gmra.mrb[0].mxu0 %v205
    %v250 = vpop.f32.mrb[0].mxu0
    %v251 = vadd.f32 0.0, %v250
    %v252 = vpop.f32.mrb[0].mxu0
    %v253 = vpop.f32.mrb[0].mxu0
    %v254 = vadd.f32 0.0, %v253
    %v255 = vpop.f32.mrb[0].mxu0
    %256 = vmatprep.mubr.bf16.mxu0 0
    %257 = vmatmul.mubr.bf16.gmra.mrb[0].mxu0 %v208
    %v258 = vpop.f32.mrb[0].mxu0
    %v259 = vadd.f32 0.0, %v258
    %v260 = vpop.f32.mrb[0].mxu0
    %v261 = vpop.f32.mrb[0].mxu0
    %v262 = vadd.f32 0.0, %v261
    %v263 = vpop.f32.mrb[0].mxu0
    %264 = vmatprep.mubr.bf16.mxu0 0
    %265 = vmatmul.mubr.bf16.gmra.mrb[0].mxu0 %v211
    %v266 = vpop.f32.mrb[0].mxu0
    %v267 = vadd.f32 0.0, %v266
    %v268 = vpop.f32.mrb[0].mxu0
    %v269 = vpop.f32.mrb[0].mxu0
    %v270 = vadd.f32 0.0, %v269
    %v271 = vpop.f32.mrb[0].mxu0
    %272 = vmatprep.mubr.bf16.mxu0 0
    %273 = vmatmul.mubr.bf16.gmra.mrb[0].mxu0 %v214
    %v274 = vpop.f32.mrb[0].mxu0
    %v275 = vadd.f32 0.0, %v274
    %v276 = vpop.f32.mrb[0].mxu0
    %v277 = vpop.f32.mrb[0].mxu0
    %v278 = vadd.f32 0.0, %v277
    %v279 = vpop.f32.mrb[0].mxu0
    %280 = vdwg.mxu0
    %v281 = vpack.c.bf16 %v254, %v251
    %v282 = vpack.c.bf16 %v262, %v259
    %v283 = vpack.c.bf16 %v270, %v267
    %v284 = vpack.c.bf16 %v278, %v275
    %286 = vset.pattern.permute.xlu0 0
    %287 = vperm.xlu0 %286, %v179
    %v288 = vpop.permute.xlu0 %287
    %291 = vset.pattern.permute.xlu0 0
    %292 = vperm.xlu0 %291, %v180
    %v293 = vpop.permute.xlu0 %292
    %296 = vset.pattern.permute.xlu0 0
    %297 = vperm.xlu0 %296, %v181
    %v298 = vpop.permute.xlu0 %297
    %301 = vset.pattern.permute.xlu0 0
    %302 = vperm.xlu0 %301, %v182
    %v303 = vpop.permute.xlu0 %302
    %v305 = vadd.bf16 %v281, %v288
    %v306 = vadd.bf16 %v282, %v293
    %v307 = vadd.bf16 %v283, %v298
    %v308 = vadd.bf16 %v284, %v303
    %v309 = vmax.bf16 %v305, 0
    %v310 = vmax.bf16 %v306, 0
    %v311 = vmax.bf16 %v307, 0
    %v312 = vmax.bf16 %v308, 0
    %s313 = scalar_lea.vmem %s3, 32
    %v314 = vld [vmem:[%s313] sm:$0xf]
    %v315 = vld [vmem:[%s313 + $0x4] sm:$0xf]
    %v316 = vld [vmem:[%s313 + $0x8] sm:$0xf]
    %v317 = vld [vmem:[%s313 + $0xc] sm:$0xf]
    %v318 = vld [vmem:[%s313 + $0x10] sm:$0xf]
    %v319 = vld [vmem:[%s313 + $0x14] sm:$0xf]
    %v320 = vld [vmem:[%s313 + $0x18] sm:$0xf]
    %v321 = vld [vmem:[%s313 + $0x1c] sm:$0xf]
    %s322 = scalar_lea.vmem %s4, 64
    %v323 = vld [vmem:[%s322] sm:$0xff]
    %v324 = vld [vmem:[%s322 + $0x8] sm:$0xff]
    %v325 = vld [vmem:[%s322 + $0x10] sm:$0xff]
    %v326 = vld [vmem:[%s322 + $0x18] sm:$0xff]
    %v327 = vld [vmem:[%s322 + $0x20] sm:$0xff]
    %v328 = vld [vmem:[%s322 + $0x28] sm:$0xff]
    %v329 = vld [vmem:[%s322 + $0x30] sm:$0xff]
    %v330 = vld [vmem:[%s322 + $0x38] sm:$0xff]
    %v331 = vpack.c.bf16 %v324, %v323
    %v332 = vpack.c.bf16 %v326, %v325
    %v333 = vpack.c.bf16 %v328, %v327
    %v334 = vpack.c.bf16 %v330, %v329
    %v343 = vunpack.c.l.b16 %v314
    %v344 = vunpack.c.l.b16 %v315
    %v345 = vunpack.c.l.b16 %v316
    %v346 = vunpack.c.l.b16 %v317
    %v347 = vunpack.c.l.b16 %v318
    %v348 = vunpack.c.l.b16 %v319
    %v349 = vunpack.c.l.b16 %v320
    %v350 = vunpack.c.l.b16 %v321
    %v351 = vpack.c.b16 %v344, %v343
    %v352 = vpack.c.b16 %v346, %v345
    %v353 = vpack.c.b16 %v348, %v347
    %v354 = vpack.c.b16 %v350, %v349
    %v356 = vsel %vm203, %v351, 0
    %v359 = vsel %vm203, %v352, 0
    %v362 = vsel %vm203, %v353, 0
    %v365 = vsel %vm203, %v354, 0
    %367 = vmatprep.subr.bf16.mxu0 0
    %368 = vmatpush1.bf16.msra.mxu0 %v309
    %369 = vmatprep.subr.bf16.mxu0 0
    %370 = vmatpush1.bf16.msra.mxu0 %v310
    %371 = vmatprep.subr.bf16.mxu0 0
    %372 = vmatpush1.bf16.msra.mxu0 %v311
    %373 = vmatprep.subr.bf16.mxu0 0
    %374 = vmatpush1.bf16.msra.mxu0 %v312
    %375 = vmatprep.subr.bf16.mxu0 0
    %376 = vmatpush1.bf16.msra.mxu0 0
    %377 = vmatprep.subr.bf16.mxu0 0
    %378 = vmatpush1.bf16.msra.mxu0 0
    %379 = vmatprep.subr.bf16.mxu0 0
    %380 = vmatpush1.bf16.msra.mxu0 0
    %381 = vmatprep.subr.bf16.mxu0 0
    %382 = vmatpush1.bf16.msra.mxu0 0
    %383 = vmatprep.subr.bf16.mxu0 0
    %384 = vmatpush1.bf16.msra.mxu0 0
    %385 = vmatprep.subr.bf16.mxu0 0
    %386 = vmatpush1.bf16.msra.mxu0 0
    %387 = vmatprep.subr.bf16.mxu0 0
    %388 = vmatpush1.bf16.msra.mxu0 0
    %389 = vmatprep.subr.bf16.mxu0 0
    %390 = vmatpush1.bf16.msra.mxu0 0
    %391 = vmatprep.subr.bf16.mxu0 0
    %392 = vmatpush1.bf16.msra.mxu0 0
    %393 = vmatprep.subr.bf16.mxu0 0
    %394 = vmatpush1.bf16.msra.mxu0 0
    %395 = vmatprep.subr.bf16.mxu0 0
    %396 = vmatpush1.bf16.msra.mxu0 0
    %397 = vmatprep.subr.bf16.mxu0 0
    %398 = vmatpush1.bf16.msra.mxu0 0
    %399 = vmatprep.mubr.bf16.mxu0 0
    %400 = vmatmul.mubr.bf16.gmra.mrb[0].mxu0 %v356
    %v401 = vpop.f32.mrb[0].mxu0
    %v402 = vadd.f32 0.0, %v401
    %v403 = vpop.f32.mrb[0].mxu0
    %v404 = vpop.f32.mrb[0].mxu0
    %v405 = vadd.f32 0.0, %v404
    %v406 = vpop.f32.mrb[0].mxu0
    %407 = vmatprep.mubr.bf16.mxu0 0
    %408 = vmatmul.mubr.bf16.gmra.mrb[0].mxu0 %v359
    %v409 = vpop.f32.mrb[0].mxu0
    %v410 = vadd.f32 0.0, %v409
    %v411 = vpop.f32.mrb[0].mxu0
    %v412 = vpop.f32.mrb[0].mxu0
    %v413 = vadd.f32 0.0, %v412
    %v414 = vpop.f32.mrb[0].mxu0
    %415 = vmatprep.mubr.bf16.mxu0 0
    %416 = vmatmul.mubr.bf16.gmra.mrb[0].mxu0 %v362
    %v417 = vpop.f32.mrb[0].mxu0
    %v418 = vadd.f32 0.0, %v417
    %v419 = vpop.f32.mrb[0].mxu0
    %v420 = vpop.f32.mrb[0].mxu0
    %v421 = vadd.f32 0.0, %v420
    %v422 = vpop.f32.mrb[0].mxu0
    %423 = vmatprep.mubr.bf16.mxu0 0
    %424 = vmatmul.mubr.bf16.gmra.mrb[0].mxu0 %v365
    %v425 = vpop.f32.mrb[0].mxu0
    %v426 = vadd.f32 0.0, %v425
    %v427 = vpop.f32.mrb[0].mxu0
    %v428 = vpop.f32.mrb[0].mxu0
    %v429 = vadd.f32 0.0, %v428
    %v430 = vpop.f32.mrb[0].mxu0
    %431 = vdwg.mxu0
    %v432 = vpack.c.bf16 %v405, %v402
    %v433 = vpack.c.bf16 %v413, %v410
    %v434 = vpack.c.bf16 %v421, %v418
    %v435 = vpack.c.bf16 %v429, %v426
    %437 = vset.pattern.permute.xlu0 0
    %438 = vperm.xlu0 %437, %v331
    %v439 = vpop.permute.xlu0 %438
    %442 = vset.pattern.permute.xlu0 0
    %443 = vperm.xlu0 %442, %v332
    %v444 = vpop.permute.xlu0 %443
    %447 = vset.pattern.permute.xlu0 0
    %448 = vperm.xlu0 %447, %v333
    %v449 = vpop.permute.xlu0 %448
    %452 = vset.pattern.permute.xlu0 0
    %453 = vperm.xlu0 %452, %v334
    %v454 = vpop.permute.xlu0 %453
    %v456 = vadd.bf16 %v432, %v439
    %v457 = vadd.bf16 %v433, %v444
    %v458 = vadd.bf16 %v434, %v449
    %v459 = vadd.bf16 %v435, %v454
    %v460 = vmax.bf16 %v456, 0
    %v461 = vmax.bf16 %v457, 0
    %v462 = vmax.bf16 %v458, 0
    %v463 = vmax.bf16 %v459, 0
    %s464 = scalar_lea.vmem %s3, 64
    %v465 = vld [vmem:[%s464] sm:$0xf]
    %v466 = vld [vmem:[%s464 + $0x4] sm:$0xf]
    %v467 = vld [vmem:[%s464 + $0x8] sm:$0xf]
    %v468 = vld [vmem:[%s464 + $0xc] sm:$0xf]
    %v469 = vld [vmem:[%s464 + $0x10] sm:$0xf]
    %v470 = vld [vmem:[%s464 + $0x14] sm:$0xf]
    %v471 = vld [vmem:[%s464 + $0x18] sm:$0xf]
    %v472 = vld [vmem:[%s464 + $0x1c] sm:$0xf]
    %s473 = scalar_lea.vmem %s4, 128
    %v474 = vld [vmem:[%s473] sm:$0xff]
    %v475 = vld [vmem:[%s473 + $0x8] sm:$0xff]
    %v476 = vld [vmem:[%s473 + $0x10] sm:$0xff]
    %v477 = vld [vmem:[%s473 + $0x18] sm:$0xff]
    %v478 = vld [vmem:[%s473 + $0x20] sm:$0xff]
    %v479 = vld [vmem:[%s473 + $0x28] sm:$0xff]
    %v480 = vld [vmem:[%s473 + $0x30] sm:$0xff]
    %v481 = vld [vmem:[%s473 + $0x38] sm:$0xff]
    %v482 = vpack.c.bf16 %v475, %v474
    %v483 = vpack.c.bf16 %v477, %v476
    %v484 = vpack.c.bf16 %v479, %v478
    %v485 = vpack.c.bf16 %v481, %v480
    %v494 = vunpack.c.l.b16 %v465
    %v495 = vunpack.c.l.b16 %v466
    %v496 = vunpack.c.l.b16 %v467
    %v497 = vunpack.c.l.b16 %v468
    %v498 = vunpack.c.l.b16 %v469
    %v499 = vunpack.c.l.b16 %v470
    %v500 = vunpack.c.l.b16 %v471
    %v501 = vunpack.c.l.b16 %v472
    %v502 = vpack.c.b16 %v495, %v494
    %v503 = vpack.c.b16 %v497, %v496
    %v504 = vpack.c.b16 %v499, %v498
    %v505 = vpack.c.b16 %v501, %v500
    %v507 = vsel %vm203, %v502, 0
    %v510 = vsel %vm203, %v503, 0
    %v513 = vsel %vm203, %v504, 0
    %v516 = vsel %vm203, %v505, 0
    %518 = vmatprep.subr.bf16.mxu0 0
    %519 = vmatpush1.bf16.msra.mxu0 %v460
    %520 = vmatprep.subr.bf16.mxu0 0
    %521 = vmatpush1.bf16.msra.mxu0 %v461
    %522 = vmatprep.subr.bf16.mxu0 0
    %523 = vmatpush1.bf16.msra.mxu0 %v462
    %524 = vmatprep.subr.bf16.mxu0 0
    %525 = vmatpush1.bf16.msra.mxu0 %v463
    %526 = vmatprep.subr.bf16.mxu0 0
    %527 = vmatpush1.bf16.msra.mxu0 0
    %528 = vmatprep.subr.bf16.mxu0 0
    %529 = vmatpush1.bf16.msra.mxu0 0
    %530 = vmatprep.subr.bf16.mxu0 0
    %531 = vmatpush1.bf16.msra.mxu0 0
    %532 = vmatprep.subr.bf16.mxu0 0
    %533 = vmatpush1.bf16.msra.mxu0 0
    %534 = vmatprep.subr.bf16.mxu0 0
    %535 = vmatpush1.bf16.msra.mxu0 0
    %536 = vmatprep.subr.bf16.mxu0 0
    %537 = vmatpush1.bf16.msra.mxu0 0
    %538 = vmatprep.subr.bf16.mxu0 0
    %539 = vmatpush1.bf16.msra.mxu0 0
    %540 = vmatprep.subr.bf16.mxu0 0
    %541 = vmatpush1.bf16.msra.mxu0 0
    %542 = vmatprep.subr.bf16.mxu0 0
    %543 = vmatpush1.bf16.msra.mxu0 0
    %544 = vmatprep.subr.bf16.mxu0 0
    %545 = vmatpush1.bf16.msra.mxu0 0
    %546 = vmatprep.subr.bf16.mxu0 0
    %547 = vmatpush1.bf16.msra.mxu0 0
    %548 = vmatprep.subr.bf16.mxu0 0
    %549 = vmatpush1.bf16.msra.mxu0 0
    %550 = vmatprep.mubr.bf16.mxu0 0
    %551 = vmatmul.mubr.bf16.gmra.mrb[0].mxu0 %v507
    %v552 = vpop.f32.mrb[0].mxu0
    %v553 = vadd.f32 0.0, %v552
    %v554 = vpop.f32.mrb[0].mxu0
    %v555 = vpop.f32.mrb[0].mxu0
    %v556 = vadd.f32 0.0, %v555
    %v557 = vpop.f32.mrb[0].mxu0
    %558 = vmatprep.mubr.bf16.mxu0 0
    %559 = vmatmul.mubr.bf16.gmra.mrb[0].mxu0 %v510
    %v560 = vpop.f32.mrb[0].mxu0
    %v561 = vadd.f32 0.0, %v560
    %v562 = vpop.f32.mrb[0].mxu0
    %v563 = vpop.f32.mrb[0].mxu0
    %v564 = vadd.f32 0.0, %v563
    %v565 = vpop.f32.mrb[0].mxu0
    %566 = vmatprep.mubr.bf16.mxu0 0
    %567 = vmatmul.mubr.bf16.gmra.mrb[0].mxu0 %v513
    %v568 = vpop.f32.mrb[0].mxu0
    %v569 = vadd.f32 0.0, %v568
    %v570 = vpop.f32.mrb[0].mxu0
    %v571 = vpop.f32.mrb[0].mxu0
    %v572 = vadd.f32 0.0, %v571
    %v573 = vpop.f32.mrb[0].mxu0
    %574 = vmatprep.mubr.bf16.mxu0 0
    %575 = vmatmul.mubr.bf16.gmra.mrb[0].mxu0 %v516
    %v576 = vpop.f32.mrb[0].mxu0
    %v577 = vadd.f32 0.0, %v576
    %v578 = vpop.f32.mrb[0].mxu0
    %v579 = vpop.f32.mrb[0].mxu0
    %v580 = vadd.f32 0.0, %v579
    %v581 = vpop.f32.mrb[0].mxu0
    %582 = vdwg.mxu0
    %v583 = vpack.c.bf16 %v556, %v553
    %v584 = vpack.c.bf16 %v564, %v561
    %v585 = vpack.c.bf16 %v572, %v569
    %v586 = vpack.c.bf16 %v580, %v577
    %588 = vset.pattern.permute.xlu0 0
    %589 = vperm.xlu0 %588, %v482
    %v590 = vpop.permute.xlu0 %589
    %593 = vset.pattern.permute.xlu0 0
    %594 = vperm.xlu0 %593, %v483
    %v595 = vpop.permute.xlu0 %594
    %598 = vset.pattern.permute.xlu0 0
    %599 = vperm.xlu0 %598, %v484
    %v600 = vpop.permute.xlu0 %599
    %603 = vset.pattern.permute.xlu0 0
    %604 = vperm.xlu0 %603, %v485
    %v605 = vpop.permute.xlu0 %604
    %v607 = vadd.bf16 %v583, %v590
    %v608 = vadd.bf16 %v584, %v595
    %v609 = vadd.bf16 %v585, %v600
    %v610 = vadd.bf16 %v586, %v605
    %v611 = vmax.bf16 %v607, 0
    %v612 = vmax.bf16 %v608, 0
    %v613 = vmax.bf16 %v609, 0
    %v614 = vmax.bf16 %v610, 0
    %s615 = scalar_lea.vmem %s3, 96
    %v616 = vld [vmem:[%s615] sm:$0xf]
    %v617 = vld [vmem:[%s615 + $0x4] sm:$0xf]
    %v618 = vld [vmem:[%s615 + $0x8] sm:$0xf]
    %v619 = vld [vmem:[%s615 + $0xc] sm:$0xf]
    %v620 = vld [vmem:[%s615 + $0x10] sm:$0xf]
    %v621 = vld [vmem:[%s615 + $0x14] sm:$0xf]
    %v622 = vld [vmem:[%s615 + $0x18] sm:$0xf]
    %v623 = vld [vmem:[%s615 + $0x1c] sm:$0xf]
    %s624 = scalar_lea.vmem %s4, 192
    %v625 = vld [vmem:[%s624] sm:$0xff]
    %v626 = vld [vmem:[%s624 + $0x8] sm:$0xff]
    %v627 = vld [vmem:[%s624 + $0x10] sm:$0xff]
    %v628 = vld [vmem:[%s624 + $0x18] sm:$0xff]
    %v629 = vld [vmem:[%s624 + $0x20] sm:$0xff]
    %v630 = vld [vmem:[%s624 + $0x28] sm:$0xff]
    %v631 = vld [vmem:[%s624 + $0x30] sm:$0xff]
    %v632 = vld [vmem:[%s624 + $0x38] sm:$0xff]
    %v633 = vpack.c.bf16 %v626, %v625
    %v634 = vpack.c.bf16 %v628, %v627
    %v635 = vpack.c.bf16 %v630, %v629
    %v636 = vpack.c.bf16 %v632, %v631
    %v645 = vunpack.c.l.b16 %v616
    %v646 = vunpack.c.l.b16 %v617
    %v647 = vunpack.c.l.b16 %v618
    %v648 = vunpack.c.l.b16 %v619
    %v649 = vunpack.c.l.b16 %v620
    %v650 = vunpack.c.l.b16 %v621
    %v651 = vunpack.c.l.b16 %v622
    %v652 = vunpack.c.l.b16 %v623
    %v653 = vpack.c.b16 %v646, %v645
    %v654 = vpack.c.b16 %v648, %v647
    %v655 = vpack.c.b16 %v650, %v649
    %v656 = vpack.c.b16 %v652, %v651
    %v658 = vsel %vm203, %v653, 0
    %v661 = vsel %vm203, %v654, 0
    %v664 = vsel %vm203, %v655, 0
    %v667 = vsel %vm203, %v656, 0
    %669 = vmatprep.subr.bf16.mxu0 0
    %670 = vmatpush1.bf16.msra.mxu0 %v611
    %671 = vmatprep.subr.bf16.mxu0 0
    %672 = vmatpush1.bf16.msra.mxu0 %v612
    %673 = vmatprep.subr.bf16.mxu0 0
    %674 = vmatpush1.bf16.msra.mxu0 %v613
    %675 = vmatprep.subr.bf16.mxu0 0
    %676 = vmatpush1.bf16.msra.mxu0 %v614
    %677 = vmatprep.subr.bf16.mxu0 0
    %678 = vmatpush1.bf16.msra.mxu0 0
    %679 = vmatprep.subr.bf16.mxu0 0
    %680 = vmatpush1.bf16.msra.mxu0 0
    %681 = vmatprep.subr.bf16.mxu0 0
    %682 = vmatpush1.bf16.msra.mxu0 0
    %683 = vmatprep.subr.bf16.mxu0 0
    %684 = vmatpush1.bf16.msra.mxu0 0
    %685 = vmatprep.subr.bf16.mxu0 0
    %686 = vmatpush1.bf16.msra.mxu0 0
    %687 = vmatprep.subr.bf16.mxu0 0
    %688 = vmatpush1.bf16.msra.mxu0 0
    %689 = vmatprep.subr.bf16.mxu0 0
    %690 = vmatpush1.bf16.msra.mxu0 0
    %691 = vmatprep.subr.bf16.mxu0 0
    %692 = vmatpush1.bf16.msra.mxu0 0
    %693 = vmatprep.subr.bf16.mxu0 0
    %694 = vmatpush1.bf16.msra.mxu0 0
    %695 = vmatprep.subr.bf16.mxu0 0
    %696 = vmatpush1.bf16.msra.mxu0 0
    %697 = vmatprep.subr.bf16.mxu0 0
    %698 = vmatpush1.bf16.msra.mxu0 0
    %699 = vmatprep.subr.bf16.mxu0 0
    %700 = vmatpush1.bf16.msra.mxu0 0
    %701 = vmatprep.mubr.bf16.mxu0 0
    %702 = vmatmul.mubr.bf16.gmra.mrb[0].mxu0 %v658
    %v703 = vpop.f32.mrb[0].mxu0
    %v704 = vadd.f32 0.0, %v703
    %v705 = vpop.f32.mrb[0].mxu0
    %v706 = vpop.f32.mrb[0].mxu0
    %v707 = vadd.f32 0.0, %v706
    %v708 = vpop.f32.mrb[0].mxu0
    %709 = vmatprep.mubr.bf16.mxu0 0
    %710 = vmatmul.mubr.bf16.gmra.mrb[0].mxu0 %v661
    %v711 = vpop.f32.mrb[0].mxu0
    %v712 = vadd.f32 0.0, %v711
    %v713 = vpop.f32.mrb[0].mxu0
    %v714 = vpop.f32.mrb[0].mxu0
    %v715 = vadd.f32 0.0, %v714
    %v716 = vpop.f32.mrb[0].mxu0
    %717 = vmatprep.mubr.bf16.mxu0 0
    %718 = vmatmul.mubr.bf16.gmra.mrb[0].mxu0 %v664
    %v719 = vpop.f32.mrb[0].mxu0
    %v720 = vadd.f32 0.0, %v719
    %v721 = vpop.f32.mrb[0].mxu0
    %v722 = vpop.f32.mrb[0].mxu0
    %v723 = vadd.f32 0.0, %v722
    %v724 = vpop.f32.mrb[0].mxu0
    %725 = vmatprep.mubr.bf16.mxu0 0
    %726 = vmatmul.mubr.bf16.gmra.mrb[0].mxu0 %v667
    %v727 = vpop.f32.mrb[0].mxu0
    %v728 = vadd.f32 0.0, %v727
    %v729 = vpop.f32.mrb[0].mxu0
    %v730 = vpop.f32.mrb[0].mxu0
    %v731 = vadd.f32 0.0, %v730
    %v732 = vpop.f32.mrb[0].mxu0
    %733 = vdwg.mxu0
    %v734 = vpack.c.bf16 %v707, %v704
    %v735 = vpack.c.bf16 %v715, %v712
    %v736 = vpack.c.bf16 %v723, %v720
    %v737 = vpack.c.bf16 %v731, %v728
    %739 = vset.pattern.permute.xlu0 0
    %740 = vperm.xlu0 %739, %v633
    %v741 = vpop.permute.xlu0 %740
    %744 = vset.pattern.permute.xlu0 0
    %745 = vperm.xlu0 %744, %v634
    %v746 = vpop.permute.xlu0 %745
    %749 = vset.pattern.permute.xlu0 0
    %750 = vperm.xlu0 %749, %v635
    %v751 = vpop.permute.xlu0 %750
    %754 = vset.pattern.permute.xlu0 0
    %755 = vperm.xlu0 %754, %v636
    %v756 = vpop.permute.xlu0 %755
    %v758 = vadd.bf16 %v734, %v741
    %v759 = vadd.bf16 %v735, %v746
    %v760 = vadd.bf16 %v736, %v751
    %v761 = vadd.bf16 %v737, %v756
    %v762 = vmax.bf16 %v758, 0
    %v763 = vmax.bf16 %v759, 0
    %v764 = vmax.bf16 %v760, 0
    %v765 = vmax.bf16 %v761, 0
    %s766 = scalar_lea.vmem %s3, 128
    %v767 = vld [vmem:[%s766] sm:$0xf]
    %v768 = vld [vmem:[%s766 + $0x4] sm:$0xf]
    %v769 = vld [vmem:[%s766 + $0x8] sm:$0xf]
    %v770 = vld [vmem:[%s766 + $0xc] sm:$0xf]
    %v771 = vld [vmem:[%s766 + $0x10] sm:$0xf]
    %v772 = vld [vmem:[%s766 + $0x14] sm:$0xf]
    %v773 = vld [vmem:[%s766 + $0x18] sm:$0xf]
    %v774 = vld [vmem:[%s766 + $0x1c] sm:$0xf]
    %s775 = scalar_lea.vmem %s4, 256
    %v776 = vld [vmem:[%s775] sm:$0xff]
    %v777 = vld [vmem:[%s775 + $0x8] sm:$0xff]
    %v778 = vld [vmem:[%s775 + $0x10] sm:$0xff]
    %v779 = vld [vmem:[%s775 + $0x18] sm:$0xff]
    %v780 = vld [vmem:[%s775 + $0x20] sm:$0xff]
    %v781 = vld [vmem:[%s775 + $0x28] sm:$0xff]
    %v782 = vld [vmem:[%s775 + $0x30] sm:$0xff]
    %v783 = vld [vmem:[%s775 + $0x38] sm:$0xff]
    %v784 = vpack.c.bf16 %v777, %v776
    %v785 = vpack.c.bf16 %v779, %v778
    %v786 = vpack.c.bf16 %v781, %v780
    %v787 = vpack.c.bf16 %v783, %v782
    %v796 = vunpack.c.l.b16 %v767
    %v797 = vunpack.c.l.b16 %v768
    %v798 = vunpack.c.l.b16 %v769
    %v799 = vunpack.c.l.b16 %v770
    %v800 = vunpack.c.l.b16 %v771
    %v801 = vunpack.c.l.b16 %v772
    %v802 = vunpack.c.l.b16 %v773
    %v803 = vunpack.c.l.b16 %v774
    %v804 = vpack.c.b16 %v797, %v796
    %v805 = vpack.c.b16 %v799, %v798
    %v806 = vpack.c.b16 %v801, %v800
    %v807 = vpack.c.b16 %v803, %v802
    %v809 = vsel %vm203, %v804, 0
    %v812 = vsel %vm203, %v805, 0
    %v815 = vsel %vm203, %v806, 0
    %v818 = vsel %vm203, %v807, 0
    %820 = vmatprep.subr.bf16.mxu0 0
    %821 = vmatpush1.bf16.msra.mxu0 %v762
    %822 = vmatprep.subr.bf16.mxu0 0
    %823 = vmatpush1.bf16.msra.mxu0 %v763
    %824 = vmatprep.subr.bf16.mxu0 0
    %825 = vmatpush1.bf16.msra.mxu0 %v764
    %826 = vmatprep.subr.bf16.mxu0 0
    %827 = vmatpush1.bf16.msra.mxu0 %v765
    %828 = vmatprep.subr.bf16.mxu0 0
    %829 = vmatpush1.bf16.msra.mxu0 0
    %830 = vmatprep.subr.bf16.mxu0 0
    %831 = vmatpush1.bf16.msra.mxu0 0
    %832 = vmatprep.subr.bf16.mxu0 0
    %833 = vmatpush1.bf16.msra.mxu0 0
    %834 = vmatprep.subr.bf16.mxu0 0
    %835 = vmatpush1.bf16.msra.mxu0 0
    %836 = vmatprep.subr.bf16.mxu0 0
    %837 = vmatpush1.bf16.msra.mxu0 0
    %838 = vmatprep.subr.bf16.mxu0 0
    %839 = vmatpush1.bf16.msra.mxu0 0
    %840 = vmatprep.subr.bf16.mxu0 0
    %841 = vmatpush1.bf16.msra.mxu0 0
    %842 = vmatprep.subr.bf16.mxu0 0
    %843 = vmatpush1.bf16.msra.mxu0 0
    %844 = vmatprep.subr.bf16.mxu0 0
    %845 = vmatpush1.bf16.msra.mxu0 0
    %846 = vmatprep.subr.bf16.mxu0 0
    %847 = vmatpush1.bf16.msra.mxu0 0
    %848 = vmatprep.subr.bf16.mxu0 0
    %849 = vmatpush1.bf16.msra.mxu0 0
    %850 = vmatprep.subr.bf16.mxu0 0
    %851 = vmatpush1.bf16.msra.mxu0 0
    %852 = vmatprep.mubr.bf16.mxu0 0
    %853 = vmatmul.mubr.bf16.gmra.mrb[0].mxu0 %v809
    %v854 = vpop.f32.mrb[0].mxu0
    %v855 = vadd.f32 0.0, %v854
    %v856 = vpop.f32.mrb[0].mxu0
    %v857 = vpop.f32.mrb[0].mxu0
    %v858 = vadd.f32 0.0, %v857
    %v859 = vpop.f32.mrb[0].mxu0
    %860 = vmatprep.mubr.bf16.mxu0 0
    %861 = vmatmul.mubr.bf16.gmra.mrb[0].mxu0 %v812
    %v862 = vpop.f32.mrb[0].mxu0
    %v863 = vadd.f32 0.0, %v862
    %v864 = vpop.f32.mrb[0].mxu0
    %v865 = vpop.f32.mrb[0].mxu0
    %v866 = vadd.f32 0.0, %v865
    %v867 = vpop.f32.mrb[0].mxu0
    %868 = vmatprep.mubr.bf16.mxu0 0
    %869 = vmatmul.mubr.bf16.gmra.mrb[0].mxu0 %v815
    %v870 = vpop.f32.mrb[0].mxu0
    %v871 = vadd.f32 0.0, %v870
    %v872 = vpop.f32.mrb[0].mxu0
    %v873 = vpop.f32.mrb[0].mxu0
    %v874 = vadd.f32 0.0, %v873
    %v875 = vpop.f32.mrb[0].mxu0
    %876 = vmatprep.mubr.bf16.mxu0 0
    %877 = vmatmul.mubr.bf16.gmra.mrb[0].mxu0 %v818
    %v878 = vpop.f32.mrb[0].mxu0
    %v879 = vadd.f32 0.0, %v878
    %v880 = vpop.f32.mrb[0].mxu0
    %v881 = vpop.f32.mrb[0].mxu0
    %v882 = vadd.f32 0.0, %v881
    %v883 = vpop.f32.mrb[0].mxu0
    %884 = vdwg.mxu0
    %v885 = vpack.c.bf16 %v858, %v855
    %v886 = vpack.c.bf16 %v866, %v863
    %v887 = vpack.c.bf16 %v874, %v871
    %v888 = vpack.c.bf16 %v882, %v879
    %890 = vset.pattern.permute.xlu0 0
    %891 = vperm.xlu0 %890, %v784
    %v892 = vpop.permute.xlu0 %891
    %895 = vset.pattern.permute.xlu0 0
    %896 = vperm.xlu0 %895, %v785
    %v897 = vpop.permute.xlu0 %896
    %900 = vset.pattern.permute.xlu0 0
    %901 = vperm.xlu0 %900, %v786
    %v902 = vpop.permute.xlu0 %901
    %905 = vset.pattern.permute.xlu0 0
    %906 = vperm.xlu0 %905, %v787
    %v907 = vpop.permute.xlu0 %906
    %v909 = vadd.bf16 %v885, %v892
    %v910 = vadd.bf16 %v886, %v897
    %v911 = vadd.bf16 %v887, %v902
    %v912 = vadd.bf16 %v888, %v907
    %v913 = vmax.bf16 %v909, 0
    %v914 = vmax.bf16 %v910, 0
    %v915 = vmax.bf16 %v911, 0
    %v916 = vmax.bf16 %v912, 0
    %s917 = scalar_lea.vmem %s3, 160
    %v918 = vld [vmem:[%s917] sm:$0xf]
    %v919 = vld [vmem:[%s917 + $0x4] sm:$0xf]
    %v920 = vld [vmem:[%s917 + $0x8] sm:$0xf]
    %v921 = vld [vmem:[%s917 + $0xc] sm:$0xf]
    %v922 = vld [vmem:[%s917 + $0x10] sm:$0xf]
    %v923 = vld [vmem:[%s917 + $0x14] sm:$0xf]
    %v924 = vld [vmem:[%s917 + $0x18] sm:$0xf]
    %v925 = vld [vmem:[%s917 + $0x1c] sm:$0xf]
    %s926 = scalar_lea.vmem %s4, 320
    %v927 = vld [vmem:[%s926] sm:$0xff]
    %v928 = vld [vmem:[%s926 + $0x8] sm:$0xff]
    %v929 = vld [vmem:[%s926 + $0x10] sm:$0xff]
    %v930 = vld [vmem:[%s926 + $0x18] sm:$0xff]
    %v931 = vld [vmem:[%s926 + $0x20] sm:$0xff]
    %v932 = vld [vmem:[%s926 + $0x28] sm:$0xff]
    %v933 = vld [vmem:[%s926 + $0x30] sm:$0xff]
    %v934 = vld [vmem:[%s926 + $0x38] sm:$0xff]
    %v935 = vpack.c.bf16 %v928, %v927
    %v936 = vpack.c.bf16 %v930, %v929
    %v937 = vpack.c.bf16 %v932, %v931
    %v938 = vpack.c.bf16 %v934, %v933
    %v947 = vunpack.c.l.b16 %v918
    %v948 = vunpack.c.l.b16 %v919
    %v949 = vunpack.c.l.b16 %v920
    %v950 = vunpack.c.l.b16 %v921
    %v951 = vunpack.c.l.b16 %v922
    %v952 = vunpack.c.l.b16 %v923
    %v953 = vunpack.c.l.b16 %v924
    %v954 = vunpack.c.l.b16 %v925
    %v955 = vpack.c.b16 %v948, %v947
    %v956 = vpack.c.b16 %v950, %v949
    %v957 = vpack.c.b16 %v952, %v951
    %v958 = vpack.c.b16 %v954, %v953
    %v960 = vsel %vm203, %v955, 0
    %v963 = vsel %vm203, %v956, 0
    %v966 = vsel %vm203, %v957, 0
    %v969 = vsel %vm203, %v958, 0
    %971 = vmatprep.subr.bf16.mxu0 0
    %972 = vmatpush1.bf16.msra.mxu0 %v913
    %973 = vmatprep.subr.bf16.mxu0 0
    %974 = vmatpush1.bf16.msra.mxu0 %v914
    %975 = vmatprep.subr.bf16.mxu0 0
    %976 = vmatpush1.bf16.msra.mxu0 %v915
    %977 = vmatprep.subr.bf16.mxu0 0
    %978 = vmatpush1.bf16.msra.mxu0 %v916
    %979 = vmatprep.subr.bf16.mxu0 0
    %980 = vmatpush1.bf16.msra.mxu0 0
    %981 = vmatprep.subr.bf16.mxu0 0
    %982 = vmatpush1.bf16.msra.mxu0 0
    %983 = vmatprep.subr.bf16.mxu0 0
    %984 = vmatpush1.bf16.msra.mxu0 0
    %985 = vmatprep.subr.bf16.mxu0 0
    %986 = vmatpush1.bf16.msra.mxu0 0
    %987 = vmatprep.subr.bf16.mxu0 0
    %988 = vmatpush1.bf16.msra.mxu0 0
    %989 = vmatprep.subr.bf16.mxu0 0
    %990 = vmatpush1.bf16.msra.mxu0 0
    %991 = vmatprep.subr.bf16.mxu0 0
    %992 = vmatpush1.bf16.msra.mxu0 0
    %993 = vmatprep.subr.bf16.mxu0 0
    %994 = vmatpush1.bf16.msra.mxu0 0
    %995 = vmatprep.subr.bf16.mxu0 0
    %996 = vmatpush1.bf16.msra.mxu0 0
    %997 = vmatprep.subr.bf16.mxu0 0
    %998 = vmatpush1.bf16.msra.mxu0 0
    %999 = vmatprep.subr.bf16.mxu0 0
    %1000 = vmatpush1.bf16.msra.mxu0 0
    %1001 = vmatprep.subr.bf16.mxu0 0
    %1002 = vmatpush1.bf16.msra.mxu0 0
    %1003 = vmatprep.mubr.bf16.mxu0 0
    %1004 = vmatmul.mubr.bf16.gmra.mrb[0].mxu0 %v960
    %v1005 = vpop.f32.mrb[0].mxu0
    %v1006 = vadd.f32 0.0, %v1005
    %v1007 = vpop.f32.mrb[0].mxu0
    %v1008 = vpop.f32.mrb[0].mxu0
    %v1009 = vadd.f32 0.0, %v1008
    %v1010 = vpop.f32.mrb[0].mxu0
    %1011 = vmatprep.mubr.bf16.mxu0 0
    %1012 = vmatmul.mubr.bf16.gmra.mrb[0].mxu0 %v963
    %v1013 = vpop.f32.mrb[0].mxu0
    %v1014 = vadd.f32 0.0, %v1013
    %v1015 = vpop.f32.mrb[0].mxu0
    %v1016 = vpop.f32.mrb[0].mxu0
    %v1017 = vadd.f32 0.0, %v1016
    %v1018 = vpop.f32.mrb[0].mxu0
    %1019 = vmatprep.mubr.bf16.mxu0 0
    %1020 = vmatmul.mubr.bf16.gmra.mrb[0].mxu0 %v966
    %v1021 = vpop.f32.mrb[0].mxu0
    %v1022 = vadd.f32 0.0, %v1021
    %v1023 = vpop.f32.mrb[0].mxu0
    %v1024 = vpop.f32.mrb[0].mxu0
    %v1025 = vadd.f32 0.0, %v1024
    %v1026 = vpop.f32.mrb[0].mxu0
    %1027 = vmatprep.mubr.bf16.mxu0 0
    %1028 = vmatmul.mubr.bf16.gmra.mrb[0].mxu0 %v969
    %v1029 = vpop.f32.mrb[0].mxu0
    %v1030 = vadd.f32 0.0, %v1029
    %v1031 = vpop.f32.mrb[0].mxu0
    %v1032 = vpop.f32.mrb[0].mxu0
    %v1033 = vadd.f32 0.0, %v1032
    %v1034 = vpop.f32.mrb[0].mxu0
    %1035 = vdwg.mxu0
    %v1036 = vpack.c.bf16 %v1009, %v1006
    %v1037 = vpack.c.bf16 %v1017, %v1014
    %v1038 = vpack.c.bf16 %v1025, %v1022
    %v1039 = vpack.c.bf16 %v1033, %v1030
    %1041 = vset.pattern.permute.xlu0 0
    %1042 = vperm.xlu0 %1041, %v935
    %v1043 = vpop.permute.xlu0 %1042
    %1046 = vset.pattern.permute.xlu0 0
    %1047 = vperm.xlu0 %1046, %v936
    %v1048 = vpop.permute.xlu0 %1047
    %1051 = vset.pattern.permute.xlu0 0
    %1052 = vperm.xlu0 %1051, %v937
    %v1053 = vpop.permute.xlu0 %1052
    %1056 = vset.pattern.permute.xlu0 0
    %1057 = vperm.xlu0 %1056, %v938
    %v1058 = vpop.permute.xlu0 %1057
    %v1060 = vadd.bf16 %v1036, %v1043
    %v1061 = vadd.bf16 %v1037, %v1048
    %v1062 = vadd.bf16 %v1038, %v1053
    %v1063 = vadd.bf16 %v1039, %v1058
    %v1064 = vmax.bf16 %v1060, 0
    %v1065 = vmax.bf16 %v1061, 0
    %v1066 = vmax.bf16 %v1062, 0
    %v1067 = vmax.bf16 %v1063, 0
    %s1068 = scalar_lea.vmem %s3, 192
    %v1069 = vld [vmem:[%s1068] sm:$0xf]
    %v1070 = vld [vmem:[%s1068 + $0x4] sm:$0xf]
    %v1071 = vld [vmem:[%s1068 + $0x8] sm:$0xf]
    %v1072 = vld [vmem:[%s1068 + $0xc] sm:$0xf]
    %v1073 = vld [vmem:[%s1068 + $0x10] sm:$0xf]
    %v1074 = vld [vmem:[%s1068 + $0x14] sm:$0xf]
    %v1075 = vld [vmem:[%s1068 + $0x18] sm:$0xf]
    %v1076 = vld [vmem:[%s1068 + $0x1c] sm:$0xf]
    %s1077 = scalar_lea.vmem %s4, 384
    %v1078 = vld [vmem:[%s1077] sm:$0xff]
    %v1079 = vld [vmem:[%s1077 + $0x8] sm:$0xff]
    %v1080 = vld [vmem:[%s1077 + $0x10] sm:$0xff]
    %v1081 = vld [vmem:[%s1077 + $0x18] sm:$0xff]
    %v1082 = vld [vmem:[%s1077 + $0x20] sm:$0xff]
    %v1083 = vld [vmem:[%s1077 + $0x28] sm:$0xff]
    %v1084 = vld [vmem:[%s1077 + $0x30] sm:$0xff]
    %v1085 = vld [vmem:[%s1077 + $0x38] sm:$0xff]
    %v1086 = vpack.c.bf16 %v1079, %v1078
    %v1087 = vpack.c.bf16 %v1081, %v1080
    %v1088 = vpack.c.bf16 %v1083, %v1082
    %v1089 = vpack.c.bf16 %v1085, %v1084
    %v1098 = vunpack.c.l.b16 %v1069
    %v1099 = vunpack.c.l.b16 %v1070
    %v1100 = vunpack.c.l.b16 %v1071
    %v1101 = vunpack.c.l.b16 %v1072
    %v1102 = vunpack.c.l.b16 %v1073
    %v1103 = vunpack.c.l.b16 %v1074
    %v1104 = vunpack.c.l.b16 %v1075
    %v1105 = vunpack.c.l.b16 %v1076
    %v1106 = vpack.c.b16 %v1099, %v1098
    %v1107 = vpack.c.b16 %v1101, %v1100
    %v1108 = vpack.c.b16 %v1103, %v1102
    %v1109 = vpack.c.b16 %v1105, %v1104
    %v1111 = vsel %vm203, %v1106, 0
    %v1114 = vsel %vm203, %v1107, 0
    %v1117 = vsel %vm203, %v1108, 0
    %v1120 = vsel %vm203, %v1109, 0
    %1122 = vmatprep.subr.bf16.mxu0 0
    %1123 = vmatpush1.bf16.msra.mxu0 %v1064
    %1124 = vmatprep.subr.bf16.mxu0 0
    %1125 = vmatpush1.bf16.msra.mxu0 %v1065
    %1126 = vmatprep.subr.bf16.mxu0 0
    %1127 = vmatpush1.bf16.msra.mxu0 %v1066
    %1128 = vmatprep.subr.bf16.mxu0 0
    %1129 = vmatpush1.bf16.msra.mxu0 %v1067
    %1130 = vmatprep.subr.bf16.mxu0 0
    %1131 = vmatpush1.bf16.msra.mxu0 0
    %1132 = vmatprep.subr.bf16.mxu0 0
    %1133 = vmatpush1.bf16.msra.mxu0 0
    %1134 = vmatprep.subr.bf16.mxu0 0
    %1135 = vmatpush1.bf16.msra.mxu0 0
    %1136 = vmatprep.subr.bf16.mxu0 0
    %1137 = vmatpush1.bf16.msra.mxu0 0
    %1138 = vmatprep.subr.bf16.mxu0 0
    %1139 = vmatpush1.bf16.msra.mxu0 0
    %1140 = vmatprep.subr.bf16.mxu0 0
    %1141 = vmatpush1.bf16.msra.mxu0 0
    %1142 = vmatprep.subr.bf16.mxu0 0
    %1143 = vmatpush1.bf16.msra.mxu0 0
    %1144 = vmatprep.subr.bf16.mxu0 0
    %1145 = vmatpush1.bf16.msra.mxu0 0
    %1146 = vmatprep.subr.bf16.mxu0 0
    %1147 = vmatpush1.bf16.msra.mxu0 0
    %1148 = vmatprep.subr.bf16.mxu0 0
    %1149 = vmatpush1.bf16.msra.mxu0 0
    %1150 = vmatprep.subr.bf16.mxu0 0
    %1151 = vmatpush1.bf16.msra.mxu0 0
    %1152 = vmatprep.subr.bf16.mxu0 0
    %1153 = vmatpush1.bf16.msra.mxu0 0
    %1154 = vmatprep.mubr.bf16.mxu0 0
    %1155 = vmatmul.mubr.bf16.gmra.mrb[0].mxu0 %v1111
    %v1156 = vpop.f32.mrb[0].mxu0
    %v1157 = vadd.f32 0.0, %v1156
    %v1158 = vpop.f32.mrb[0].mxu0
    %v1159 = vpop.f32.mrb[0].mxu0
    %v1160 = vadd.f32 0.0, %v1159
    %v1161 = vpop.f32.mrb[0].mxu0
    %1162 = vmatprep.mubr.bf16.mxu0 0
    %1163 = vmatmul.mubr.bf16.gmra.mrb[0].mxu0 %v1114
    %v1164 = vpop.f32.mrb[0].mxu0
    %v1165 = vadd.f32 0.0, %v1164
    %v1166 = vpop.f32.mrb[0].mxu0
    %v1167 = vpop.f32.mrb[0].mxu0
    %v1168 = vadd.f32 0.0, %v1167
    %v1169 = vpop.f32.mrb[0].mxu0
    %1170 = vmatprep.mubr.bf16.mxu0 0
    %1171 = vmatmul.mubr.bf16.gmra.mrb[0].mxu0 %v1117
    %v1172 = vpop.f32.mrb[0].mxu0
    %v1173 = vadd.f32 0.0, %v1172
    %v1174 = vpop.f32.mrb[0].mxu0
    %v1175 = vpop.f32.mrb[0].mxu0
    %v1176 = vadd.f32 0.0, %v1175
    %v1177 = vpop.f32.mrb[0].mxu0
    %1178 = vmatprep.mubr.bf16.mxu0 0
    %1179 = vmatmul.mubr.bf16.gmra.mrb[0].mxu0 %v1120
    %v1180 = vpop.f32.mrb[0].mxu0
    %v1181 = vadd.f32 0.0, %v1180
    %v1182 = vpop.f32.mrb[0].mxu0
    %v1183 = vpop.f32.mrb[0].mxu0
    %v1184 = vadd.f32 0.0, %v1183
    %v1185 = vpop.f32.mrb[0].mxu0
    %1186 = vdwg.mxu0
    %v1187 = vpack.c.bf16 %v1160, %v1157
    %v1188 = vpack.c.bf16 %v1168, %v1165
    %v1189 = vpack.c.bf16 %v1176, %v1173
    %v1190 = vpack.c.bf16 %v1184, %v1181
    %1192 = vset.pattern.permute.xlu0 0
    %1193 = vperm.xlu0 %1192, %v1086
    %v1194 = vpop.permute.xlu0 %1193
    %1197 = vset.pattern.permute.xlu0 0
    %1198 = vperm.xlu0 %1197, %v1087
    %v1199 = vpop.permute.xlu0 %1198
    %1202 = vset.pattern.permute.xlu0 0
    %1203 = vperm.xlu0 %1202, %v1088
    %v1204 = vpop.permute.xlu0 %1203
    %1207 = vset.pattern.permute.xlu0 0
    %1208 = vperm.xlu0 %1207, %v1089
    %v1209 = vpop.permute.xlu0 %1208
    %v1211 = vadd.bf16 %v1187, %v1194
    %v1212 = vadd.bf16 %v1188, %v1199
    %v1213 = vadd.bf16 %v1189, %v1204
    %v1214 = vadd.bf16 %v1190, %v1209
    %v1215 = vmax.bf16 %v1211, 0
    %v1216 = vmax.bf16 %v1212, 0
    %v1217 = vmax.bf16 %v1213, 0
    %v1218 = vmax.bf16 %v1214, 0
    %1220 = vset.pattern.permute.xlu0 0
    %1221 = vperm.xlu0 %1220, %v47
    %v1222 = vpop.permute.xlu0 %1221
    %v1224 = vlaneseq
    %v1225 = vshrl.u32 %v1224, 7
    %v1226 = vsub.s32 0, %v1225
    %v1227 = vrot.slane %v1222, %v1226
    %v1229 = vsel %vm203, %v46, 0
    %1231 = vmatprep.subr.bf16.mxu0 0
    %1232 = vmatpush1.bf16.msra.mxu0 %v1215
    %1233 = vmatprep.subr.bf16.mxu0 0
    %1234 = vmatpush1.bf16.msra.mxu0 %v1216
    %1235 = vmatprep.subr.bf16.mxu0 0
    %1236 = vmatpush1.bf16.msra.mxu0 %v1217
    %1237 = vmatprep.subr.bf16.mxu0 0
    %1238 = vmatpush1.bf16.msra.mxu0 %v1218
    %1239 = vmatprep.subr.bf16.mxu0 0
    %1240 = vmatpush1.bf16.msra.mxu0 0
    %1241 = vmatprep.subr.bf16.mxu0 0
    %1242 = vmatpush1.bf16.msra.mxu0 0
    %1243 = vmatprep.subr.bf16.mxu0 0
    %1244 = vmatpush1.bf16.msra.mxu0 0
    %1245 = vmatprep.subr.bf16.mxu0 0
    %1246 = vmatpush1.bf16.msra.mxu0 0
    %1247 = vmatprep.subr.bf16.mxu0 0
    %1248 = vmatpush1.bf16.msra.mxu0 0
    %1249 = vmatprep.subr.bf16.mxu0 0
    %1250 = vmatpush1.bf16.msra.mxu0 0
    %1251 = vmatprep.subr.bf16.mxu0 0
    %1252 = vmatpush1.bf16.msra.mxu0 0
    %1253 = vmatprep.subr.bf16.mxu0 0
    %1254 = vmatpush1.bf16.msra.mxu0 0
    %1255 = vmatprep.subr.bf16.mxu0 0
    %1256 = vmatpush1.bf16.msra.mxu0 0
    %1257 = vmatprep.subr.bf16.mxu0 0
    %1258 = vmatpush1.bf16.msra.mxu0 0
    %1259 = vmatprep.subr.bf16.mxu0 0
    %1260 = vmatpush1.bf16.msra.mxu0 0
    %1261 = vmatprep.subr.bf16.mxu0 0
    %1262 = vmatpush1.bf16.msra.mxu0 0
    %1263 = vmatprep.mubr.bf16.mxu0 0
    %1264 = vmatmul.mubr.bf16.gmra.mrb[0].mxu0 %v1229
    %v1265 = vpop.f32.mrb[0].mxu0
    %v1266 = vadd.f32 %v1227, %v1265
    %v1267 = vpop.f32.mrb[0].mxu0
    %v1268 = vpop.f32.mrb[0].mxu0
    %v1269 = vpop.f32.mrb[0].mxu0
    %1270 = vdwg.mxu0
    %1271 = vst [vmem:[#allocation3] sm:$0x1] %v1266
    // Predicated region
    $region30: #{tpu_custom_call.1} parent=1 // pred_check
      _
    $region31: #{tpu_custom_call.1} parent=1 // pred_check_branch
      %1273 = sbr.rel (0) target = $region33
    $region32: #{tpu_custom_call.1} parent=1 // pred_region
      %s1275 = ssub.s32 16, 16
      %1276 = vsyncadd [#allocation4], %s1275
      %s1278 = sshll.u32 [#allocation3], 4
      %s1279 = int_to_ptr.vmem [resolvable:$true] %s1278
      %1281 = dma.vmem_to_hbm [thread:$0]  %s1279, 16, %s7, [#allocation4]
    $region33: #{tpu_custom_call.1} parent=1 // pred_fallthru
      _
    // Predicated region
    $region34: #{tpu_custom_call.1} parent=1 // pred_check
      _
    $region35: #{tpu_custom_call.1} parent=1 // pred_check_branch
      %1283 = sbr.rel (0) target = $region37
    $region36: #{tpu_custom_call.1} parent=1 // pred_region
      %1284 = dma.done [#allocation4], 16
    $region37: #{tpu_custom_call.1} parent=1 // pred_fallthru
      _
    %1285 = vsyncpa [#allocation4], 1

</llo_original>
